<compile_context>
chip_gen: v7x
topology: tpu7x:2x2x1
jax: 0.10.0
libtpu: 0.0.40
codegen_flags: <defaults>
</compile_context>

<pallas_src>
import jax
import jax.numpy as jnp
import numpy as np
from jax.experimental import pallas as pl
from jax.experimental.pallas import tpu as pltpu


def _padding_packer_kernel(lens_ref, x_ref, w_ref, b_ref, o_ref, acc_ref):
    # lens_ref : SMEM (B,) int32   -- scalar-prefetched per-batch lengths
    # x_ref    : VMEM (RT, TK) bf16   (batch dim squeezed by BlockSpec)
    # w_ref    : VMEM (TK, TC) bf16
    # b_ref    : VMEM (1, TC)  f32
    # o_ref    : VMEM (RT, TC) out dtype (batch dim squeezed)
    # acc_ref  : VMEM (RT, TC) f32 scratch accumulator (K tiling)
    b = pl.program_id(0)
    t = pl.program_id(1)
    k = pl.program_id(3)
    nk = pl.num_programs(3)

    rows = o_ref.shape[0]
    t_base = t * rows
    length_b = lens_ref[b]
    tile_has_valid = t_base < length_b   # time index increases within a tile

    @pl.when(k == 0)
    def _init():
        acc_ref[...] = jnp.zeros_like(acc_ref)

    # Tiles that are entirely past the sequence length skip the MXU.
    @pl.when(tile_has_valid)
    def _accumulate():
        acc_ref[...] += jnp.dot(x_ref[...], w_ref[...],
                                preferred_element_type=jnp.float32)

    @pl.when(k == nk - 1)
    def _finalize():
        # Per-row validity computed in-kernel -> no (N,1) validity HBM stream.
        t_idx = t_base + jax.lax.broadcasted_iota(jnp.int32, (rows, 1), 0)
        mask = t_idx < length_b                      # (RT, 1), lane-broadcast
        y = acc_ref[...] + b_ref[...]                # f32 VPU math (v5e-safe)
        o_ref[...] = jnp.where(mask, y, 0.0).astype(o_ref.dtype)


def _vmem_need_bytes(row_tile, col_tile, tk, out_itemsize):
    # Double-buffered input/output tiles (bf16 x/w, f32 bias) + f32 accumulator.
    return (2 * row_tile * tk * 2
            + 2 * tk * col_tile * 2
            + 2 * col_tile * 4
            + 2 * row_tile * col_tile * out_itemsize
            + row_tile * col_tile * 4)


def padding_packer_forward(x, w, bias, lengths=None, total_length=None):
    """JAX/Pallas equivalent of PaddingPacker(nn.Linear(H_in, H_out)).forward.

    x: [B, T, H_in] (batch_first); w: [H_in, H_out]; bias: [H_out];
    lengths: [B] ints (descending, as pack_padded_sequence requires) or None.
    """
    B, T, H_in = x.shape
    H_out = w.shape[1]
    out_dtype = x.dtype

    if lengths is None:
        # PyTorch path without packing: plain row-wise module, no masking.
        T_eff, T_out = T, T
        lengths = jnp.full((B,), T, dtype=jnp.int32)
    else:
        T_out = T if total_length is None else int(total_length)
        T_eff = min(T, T_out)
        if T_eff != T:
            # TODO(synk): PyTorch raises when total_length < max(lengths); we truncate silently.
            x = x[:, :T_eff, :]
        lengths = lengths.astype(jnp.int32)

    # bf16 operands into the MXU; accumulation / bias / mask / store stay f32.
    x_bf = x.astype(jnp.bfloat16)
    w_bf = w.astype(jnp.bfloat16)
    bias2d = bias.astype(jnp.float32).reshape(1, H_out)

    # Per-chip VMEM budget (~80% of physical capacity: headroom on v7x's
    # 64 MiB, full use of the 128 MiB on v5e/v6e).
    try:
        vmem_cap = int(pltpu.get_tpu_info().vmem_capacity_bytes)
    except Exception:  # pragma: no cover - conservative fallback
        vmem_cap = 64 << 20
    vmem_budget = int(0.8 * vmem_cap)
    headroom = 8 << 20

    # ---- tile selection ----------------------------------------------------
    # K (H_in) tiling only for very large H_in; exact divisors avoid partial
    # (garbage-contaminated) K tiles.
    if H_in <= 2048:
        tk = H_in
    else:
        tk = H_in
        for cand in (2048, 1024, 512, 256, 128):
            if H_in % cand == 0:
                tk = cand
                break

    # Row (time) tile: sublane-aligned and large to amortize per-grid-step
    # overhead; 1024 on 128 MiB chips with moderate H_in.
    desired_rows = 1024 if (vmem_cap >= (100 << 20) and H_in <= 2048) else 512
    row_tile = T_eff if T_eff <= desired_rows else desired_rows

    # Column tile: prefer the full H_out so the w/bias block index is constant
    # (weights fetched exactly once); fall back to smaller lane-dense tiles if
    # the VMEM budget would be exceeded.  When H_out % 128 != 0 write H_out
    # directly (masked stores) instead of lane-padding + slicing.
    out_itemsize = jnp.dtype(out_dtype).itemsize
    if H_out % 128 != 0:
        col_tile = H_out
    else:
        col_tile = 128
        for cand in sorted({H_out, 2048, 1024, 512, 256, 128}, reverse=True):
            if cand > H_out:
                continue
            if _vmem_need_bytes(row_tile, cand, tk, out_itemsize) + headroom <= vmem_budget:
                col_tile = cand
                break

    num_t = pl.cdiv(T_eff, row_tile)
    num_col = pl.cdiv(H_out, col_tile)
    num_k = pl.cdiv(H_in, tk)

    need = _vmem_need_bytes(row_tile, col_tile, tk, out_itemsize)
    vmem_limit = int(min(max(need + headroom, 32 << 20), vmem_budget))

    grid_spec = pltpu.PrefetchScalarGridSpec(
        num_scalar_prefetch=1,
        grid=(B, num_t, num_col, num_k),
        in_specs=[
            pl.BlockSpec((None, row_tile, tk), lambda b, t, j, k, lens: (b, t, k)),
            pl.BlockSpec((tk, col_tile), lambda b, t, j, k, lens: (k, j)),
            pl.BlockSpec((1, col_tile), lambda b, t, j, k, lens: (0, j)),
        ],
        out_specs=pl.BlockSpec((None, row_tile, col_tile),
                               lambda b, t, j, k, lens: (b, t, j)),
        scratch_shapes=[pltpu.VMEM((row_tile, col_tile), jnp.float32)],
    )

    out = pl.pallas_call(
        _padding_packer_kernel,
        out_shape=jax.ShapeDtypeStruct((B, T_eff, H_out), out_dtype),
        grid_spec=grid_spec,
        compiler_params=pltpu.CompilerParams(
            # batch/time axes feed the megacore split; the (often tiny) column
            # axis and the K reduction stay "arbitrary".
            dimension_semantics=("parallel", "parallel", "arbitrary", "arbitrary"),
            vmem_limit_bytes=vmem_limit),
    )(lengths, x_bf, w_bf, bias2d)

    if T_out > T_eff:
        # total_length > T: extra timesteps are pure padding.  Append zeros on
        # the small output instead of re-writing x in HBM before the kernel.
        out = jnp.pad(out, ((0, 0), (0, T_out - T_eff), (0, 0)))
    return out


def _reference(x, w, bias, lengths, total_length):
    # Pure-JAX PaddingPacker(nn.Linear) reference using the same bf16 operand
    # rounding the kernel uses (with f32 accumulation), so tolerances stay tight.
    B, T, H_in = x.shape
    T_out = T if total_length is None else int(total_length)
    T_eff = min(T, T_out)
    xb = x.astype(jnp.bfloat16).astype(jnp.float32)
    wb = w.astype(jnp.bfloat16).astype(jnp.float32)
    y = jnp.einsum("bth,ho->bto", xb[:, :T_eff], wb,
                   precision=jax.lax.Precision.HIGHEST) + bias[None, None, :]
    if T_out > T_eff:
        y = jnp.pad(y, ((0, 0), (0, T_out - T_eff), (0, 0)))
    if lengths is None:
        return y
    t_idx = jnp.arange(T_out)[None, :, None]
    mask = t_idx < lengths[:, None, None]
    return jnp.where(mask, y, 0.0)


if __name__ == "__main__":
    B, T, H_in, H_out = 2, 8, 32, 32

    key = jax.random.PRNGKey(0)
    kx, kw, kb = jax.random.split(key, 3)

    x = jax.random.normal(kx, (B, T, H_in), dtype=jnp.float32)
    # Deterministic nn.Linear(H_in, H_out) init (uniform +/- 1/sqrt(H_in)).
    bound = 1.0 / np.sqrt(H_in)
    w = jax.random.uniform(kw, (H_in, H_out), dtype=jnp.float32,
                           minval=-bound, maxval=bound)
    bias = jax.random.uniform(kb, (H_out,), dtype=jnp.float32,
                              minval=-bound, maxval=bound)

    # pack_padded_sequence (enforce_sorted=True) requires descending lengths.
    lengths = jnp.array([8, 5], dtype=jnp.int32)

    # Packed path, total_length == T.
    out = jax.block_until_ready(
        padding_packer_forward(x, w, bias, lengths=lengths, total_length=T))
    ref = _reference(x, w, bias, lengths, T)
    np.testing.assert_allclose(np.asarray(out), np.asarray(ref),
                               rtol=1e-5, atol=1e-5)

    # Packed path, total_length > T (appended timesteps are zero padding).
    out2 = jax.block_until_ready(
        padding_packer_forward(x, w, bias, lengths=lengths, total_length=T + 4))
    ref2 = _reference(x, w, bias, lengths, T + 4)
    np.testing.assert_allclose(np.asarray(out2), np.asarray(ref2),
                               rtol=1e-5, atol=1e-5)

    # Unpacked path (lengths=None): plain row-wise module, no masking.
    out3 = jax.block_until_ready(padding_packer_forward(x, w, bias))
    ref3 = _reference(x, w, bias, None, None)
    np.testing.assert_allclose(np.asarray(out3), np.asarray(ref3),
                               rtol=1e-5, atol=1e-5)

    print("KERNEL_OK")
</pallas_src>

<mosaic_0001>
module attributes {stable_mosaic.version = 11 : i64} {
  func.func @_padding_packer_kernel(%arg0: i32, %arg1: i32, %arg2: i32, %arg3: i32, %arg4: memref<2xi32, #tpu.memory_space<smem>>, %arg5: memref<1x8x32xbf16, #tpu.memory_space<vmem>>, %arg6: memref<32x32xbf16, #tpu.memory_space<vmem>>, %arg7: memref<1x32xf32, #tpu.memory_space<vmem>>, %arg8: memref<1x8x32xf32, #tpu.memory_space<vmem>>, %arg9: memref<8x32xf32, #tpu.memory_space<vmem>>) attributes {dimension_semantics = [#tpu.dimension_semantics<parallel>, #tpu.dimension_semantics<parallel>, #tpu.dimension_semantics<arbitrary>, #tpu.dimension_semantics<arbitrary>], iteration_bounds = array<i64: 2, 1, 1, 1>, scalar_prefetch = 1 : i64, scratch_operands = 1 : i64, tpu.core_type = #tpu.core_type<tc>, window_params = [{transform_indices = @transform_0, window_bounds = array<i64: 1, 8, 32>}, {transform_indices = @transform_1, window_bounds = array<i64: 32, 32>}, {transform_indices = @transform_2, window_bounds = array<i64: 1, 32>}, {transform_indices = @transform_3, window_bounds = array<i64: 1, 8, 32>}]} {
    %c8_i32 = arith.constant 8 : i32
    %0 = arith.muli %arg1, %c8_i32 : i32
    %1 = arith.index_cast %arg0 : i32 to index
    %2 = memref.load %arg4[%1] : memref<2xi32, #tpu.memory_space<smem>>
    %3 = arith.cmpi slt, %0, %2 : i32
    %c0_i32 = arith.constant 0 : i32
    %4 = arith.cmpi eq, %arg3, %c0_i32 : i32
    %5 = arith.extui %4 : i1 to i32
    %c0_i32_0 = arith.constant 0 : i32
    %6 = arith.cmpi ne, %5, %c0_i32_0 : i32
    scf.if %6 {
      %cst = arith.constant 0.000000e+00 : f32
      %12 = vector.broadcast %cst : f32 to vector<8x32xf32>
      %c0 = arith.constant 0 : index
      %c0_4 = arith.constant 0 : index
      %13 = vector.load %arg9[%c0, %c0_4] : memref<8x32xf32, #tpu.memory_space<vmem>>, vector<8x32xf32>
      tpu.vector_store %arg9[%c0, %c0_4], %12 {strides = array<i32>} : memref<8x32xf32, #tpu.memory_space<vmem>>, vector<8x32xf32>,
    } else {
    }
    %7 = arith.extui %3 : i1 to i32
    %c0_i32_1 = arith.constant 0 : i32
    %8 = arith.cmpi ne, %7, %c0_i32_1 : i32
    scf.if %8 {
      %c0 = arith.constant 0 : index
      %c0_4 = arith.constant 0 : index
      %12 = vector.load %arg9[%c0, %c0_4] : memref<8x32xf32, #tpu.memory_space<vmem>>, vector<8x32xf32>
      %c0_5 = arith.constant 0 : index
      %c0_6 = arith.constant 0 : index
      %c0_7 = arith.constant 0 : index
      %13 = vector.load %arg5[%c0_5, %c0_6, %c0_7] : memref<1x8x32xbf16, #tpu.memory_space<vmem>>, vector<1x8x32xbf16>
      %14 = vector.shape_cast %13 : vector<1x8x32xbf16> to vector<8x32xbf16>
      %c0_8 = arith.constant 0 : index
      %c0_9 = arith.constant 0 : index
      %15 = vector.load %arg6[%c0_8, %c0_9] : memref<32x32xbf16, #tpu.memory_space<vmem>>, vector<32x32xbf16>
      %cst = arith.constant dense<0.000000e+00> : vector<8x32xf32>
      %16 = tpu.matmul %14, %15, %cst {dimension_numbers = #tpu.dot_dimension_numbers<[1], [0], [0], [1], [0, 0, 1, 1], [], []>} : vector<8x32xbf16>, vector<32x32xbf16>, vector<8x32xf32> -> vector<8x32xf32>
      %17 = arith.addf %12, %16 : vector<8x32xf32>
      %c0_10 = arith.constant 0 : index
      %c0_11 = arith.constant 0 : index
      %18 = vector.load %arg9[%c0_10, %c0_11] : memref<8x32xf32, #tpu.memory_space<vmem>>, vector<8x32xf32>
      tpu.vector_store %arg9[%c0_10, %c0_11], %17 {strides = array<i32>} : memref<8x32xf32, #tpu.memory_space<vmem>>, vector<8x32xf32>,
    } else {
    }
    %c0_i32_2 = arith.constant 0 : i32
    %9 = arith.cmpi eq, %arg3, %c0_i32_2 : i32
    %10 = arith.extui %9 : i1 to i32
    %c0_i32_3 = arith.constant 0 : i32
    %11 = arith.cmpi ne, %10, %c0_i32_3 : i32
    scf.if %11 {
      %12 = tpu.iota {dimensions = array<i32: 0>} : vector<8x1xi32>
      %13 = vector.broadcast %0 : i32 to vector<8x1xi32>
      %14 = arith.addi %13, %12 : vector<8x1xi32>
      %15 = vector.broadcast %2 : i32 to vector<8x1xi32>
      %16 = arith.cmpi slt, %14, %15 : vector<8x1xi32>
      %c0 = arith.constant 0 : index
      %c0_4 = arith.constant 0 : index
      %17 = vector.load %arg9[%c0, %c0_4] : memref<8x32xf32, #tpu.memory_space<vmem>>, vector<8x32xf32>
      %c0_5 = arith.constant 0 : index
      %c0_6 = arith.constant 0 : index
      %18 = vector.load %arg7[%c0_5, %c0_6] : memref<1x32xf32, #tpu.memory_space<vmem>>, vector<1x32xf32>
      %19 = vector.broadcast %18 : vector<1x32xf32> to vector<8x32xf32>
      %20 = arith.addf %17, %19 : vector<8x32xf32>
      %cst = arith.constant 0.000000e+00 : f32
      %21 = vector.shape_cast %16 : vector<8x1xi1> to vector<8x1xi1>
      %22 = vector.broadcast %21 : vector<8x1xi1> to vector<8x32xi1>
      %23 = vector.broadcast %cst : f32 to vector<8x32xf32>
      %24 = arith.select %22, %20, %23 : vector<8x32xi1>, vector<8x32xf32>
      %c0_7 = arith.constant 0 : index
      %c0_8 = arith.constant 0 : index
      %c0_9 = arith.constant 0 : index
      %25 = vector.load %arg8[%c0_7, %c0_8, %c0_9] : memref<1x8x32xf32, #tpu.memory_space<vmem>>, vector<1x8x32xf32>
      %26 = vector.shape_cast %25 : vector<1x8x32xf32> to vector<8x32xf32>
      %27 = vector.shape_cast %24 : vector<8x32xf32> to vector<1x8x32xf32>
      tpu.vector_store %arg8[%c0_7, %c0_8, %c0_9], %27 {strides = array<i32>} : memref<1x8x32xf32, #tpu.memory_space<vmem>>, vector<1x8x32xf32>,
    } else {
    }
    return
  }
  func.func @transform_0(%arg0: i32, %arg1: i32, %arg2: i32, %arg3: i32, %arg4: memref<2xi32, #tpu.memory_space<smem>>) -> (i32, i32, i32) {
    %c0_i32 = arith.constant 0 : i32
    return %arg0, %arg1, %arg3 : i32, i32, i32
  }
  func.func @transform_1(%arg0: i32, %arg1: i32, %arg2: i32, %arg3: i32, %arg4: memref<2xi32, #tpu.memory_space<smem>>) -> (i32, i32) {
    %c0_i32 = arith.constant 0 : i32
    return %arg3, %arg2 : i32, i32
  }
  func.func @transform_2(%arg0: i32, %arg1: i32, %arg2: i32, %arg3: i32, %arg4: memref<2xi32, #tpu.memory_space<smem>>) -> (i32, i32) {
    %c0_i32 = arith.constant 0 : i32
    %c0_i32_0 = arith.constant 0 : i32
    return %c0_i32, %arg2 : i32, i32
  }
  func.func @transform_3(%arg0: i32, %arg1: i32, %arg2: i32, %arg3: i32, %arg4: memref<2xi32, #tpu.memory_space<smem>>) -> (i32, i32, i32) {
    %c0_i32 = arith.constant 0 : i32
    return %arg0, %arg1, %arg2 : i32, i32, i32
  }
}

</mosaic_0001>

<llo_original>
// kernel: tpu_custom_call.1
$region0: #{tpu_custom_call.1}
  #allocation0 [shape = 'u32[]', space=smem, size = 0x4, offset = 0x4, fixed_abs, tag = 'smem constant byte address 0x4 - core index']
  #allocation1 [shape = 'u32[144,128]{1,0:T(1,128)}', space=vmem, size = 0x12000, scoped, tag = 'internal scratch']
  #allocation2 [shape = 'f32[8,32]{1,0:T(8,128)}', space=vmem, size = 0x1000, scoped, tag = 'scratch operand']
  #allocation3 [shape = 's32[1]{0}', space=sflag, size = 0x4, scoped, tag = 'scoped memory for tpu_custom_call.1']
  #allocation4 [shape = 'u8[512]{0}', space=smem, size = 0x200, scoped, tag = 'prefetched SMEM operand 0']
  %s0 = inlined_call_operand.hbm [shape: s32[2], index: 0, kind: input, shape index: {}]
  %s1 = inlined_call_operand.hbm [shape: bf16[2,8,32], index: 1, kind: input, shape index: {}]
  %s2 = inlined_call_operand.hbm [shape: bf16[32,32], index: 2, kind: input, shape index: {}]
  %s3 = inlined_call_operand.vmem [shape: f32[1,32], index: 3, kind: input, shape index: {}]
  %s4 = inlined_call_operand.hbm [shape: f32[2,8,32], index: 4, kind: output, shape index: {}]
  %s5 = sld [smem:[#allocation0]]
  $region65: #{tpu_custom_call.1} parent=0
    _
  %s7 = ssub.s32 1, %s5
  %s8 = scalar_select 0, %s7, %s5
  %10 = dma.hbm_to_smem %s0, 16, [#allocation4], [#allocation3]
  %11 = dma.done [#allocation3], 16
  %12 = sfence
  $region1: #{tpu_custom_call.1} parent=0
    #allocation5 [shape = 'u8[4096]{0}', space=vmem, size = 0x1000, scoped, tag = 'input window, operand 1']
    #allocation6 [shape = 's32[2]{0}', space=sflag, size = 0x8, scoped, tag = 'scoped memory for tpu_custom_call.1']
    #allocation7 [shape = 's32[2]{0}', space=sflag, size = 0x8, scoped, tag = 'scoped memory for tpu_custom_call.1']
    #allocation8 [shape = 'u8[8192]{0}', space=vmem, size = 0x2000, scoped, tag = 'input window, operand 2, single buffered']
    #allocation9 [shape = 's32[1]{0}', space=sflag, size = 0x4, scoped, tag = 'scoped memory for tpu_custom_call.1']
    #allocation10 [shape = 'u8[8192]{0}', space=vmem, size = 0x2000, scoped, tag = 'output window, operand 0']
    %13 = vsyncpa [#allocation6], 0
    %s14 = scalar_lea.sflag [#allocation6], 1
    %15 = vsyncpa %s14, 0
    %16 = vsyncpa [#allocation9], 0
    %17 = vsyncpa [#allocation7], 0
    %s18 = scalar_lea.sflag [#allocation7], 1
    %19 = vsyncpa %s18, 0
    loop: start=0, step=1, limit=4
    $region2: #{tpu_custom_call.1} parent=1 // loop_pre_header
      _
    $region3: #{tpu_custom_call.1} parent=1 // loop_header
      %s21 = sphi 0, %s25
      %p22 = scmp.ge.s32.totalorder %s21, 4
      %s28 = sphi 0, %s54
      %s29 = sphi 0, %s50
      %s30 = sphi 0, %s46
      %s31 = sphi 0, %s42
      %s32 = sphi 0, %s28
      %s33 = sphi 0, %s29
      %s34 = sphi 0, %s30
      %s35 = sphi 0, %s31
      %s36 = sphi 0, %s32
      %s37 = sphi 0, %s33
      %s38 = sphi 0, %s34
      %s39 = sphi 0, %s35
      %s61 = sphi 0, %s63
      %s64 = sphi 0, %s61
      %s65 = sphi 0, %s64
      %s81 = sphi 0, %s65
      %s89 = sphi 0, %s91
      %s92 = sphi 0, %s89
      %s93 = sphi 0, %s92
      %s109 = sphi 0, %s93
      %s115 = sphi 0, %s117
      %s118 = sphi 0, %s115
      %s119 = sphi 0, %s118
      %s135 = sphi 0, %s119
      %s145 = sphi 0, %s147
      %s148 = sphi 0, %s145
      %s149 = sphi 0, %s148
      %s165 = sphi 0, %s149
    $region4: #{tpu_custom_call.1} parent=1 // loop_header_branch
      %24 = sbr.rel (%p22) target = $region8
    $region5: #{tpu_custom_call.1} parent=1 // loop_body
      %s26 = ssub.s32 %s21, 1
      %s27 = ssub.s32 %s21, 2
      %s40 = sadd.s32 1, %s31
      %p41 = scmp.ge.s32.totalorder %s40, 1
      %s42 = scalar_select %p41, 0, %s40
      %s43 = sadd.s32 1, %s30
      %s44 = scalar_select %p41, %s43, %s30
      %p45 = scmp.ge.s32.totalorder %s44, 1
      %s46 = scalar_select %p45, 0, %s44
      %s47 = sadd.s32 1, %s29
      %s48 = scalar_select %p45, %s47, %s29
      %p49 = scmp.ge.s32.totalorder %s48, 1
      %s50 = scalar_select %p49, 0, %s48
      %s51 = sadd.s32 1, %s28
      %s52 = scalar_select %p49, %s51, %s28
      %p53 = scmp.ge.s32.totalorder %s52, 2
      %s54 = scalar_select %p53, 0, %s52
      %s55 = ssub.s32 %s28, %s54
      %s56 = ssub.s32 %s29, %s50
      %s57 = sor.u32 %s55, %s56
      %s58 = ssub.s32 %s31, %s42
      %s59 = sor.u32 %s57, %s58
      %p60 = scmp.eq.s32.totalorder %s59, 0
      %s62 = sadd.s32 %s61, 1
      %s63 = scalar_select %p60, %s61, %s62
      %p66 = pneg %p60
      %p67 = scmp.eq.s32.totalorder %s21, 1
      %p68 = por %p66, %p67
      %p69 = scmp.ne.s32.totalorder %s61, %s64
      %p70 = scmp.eq.s32.totalorder %s21, 0
      %p71 = por %p69, %p70
      %p72 = scmp.ne.s32.totalorder %s61, %s64
      %p73 = scmp.eq.s32.totalorder %s26, 1
      %p74 = por %p72, %p73
      %p75 = scmp.ne.s32.totalorder %s64, %s65
      %p76 = scmp.eq.s32.totalorder %s26, 0
      %p77 = por %p75, %p76
      %p78 = scmp.ne.s32.totalorder %s64, %s65
      %p79 = scmp.eq.s32.totalorder %s27, 1
      %p80 = por %p78, %p79
      %p82 = scmp.ne.s32.totalorder %s65, %s81
      %p83 = scmp.eq.s32.totalorder %s27, 0
      %p84 = por %p82, %p83
      %s85 = ssub.s32 %s31, %s42
      %s86 = ssub.s32 %s30, %s46
      %s87 = sor.u32 %s85, %s86
      %p88 = scmp.eq.s32.totalorder %s87, 0
      %s90 = sadd.s32 %s89, 1
      %s91 = scalar_select %p88, %s89, %s90
      %p94 = pneg %p88
      %p95 = scmp.eq.s32.totalorder %s21, 1
      %p96 = por %p94, %p95
      %p97 = scmp.ne.s32.totalorder %s89, %s92
      %p98 = scmp.eq.s32.totalorder %s21, 0
      %p99 = por %p97, %p98
      %p100 = scmp.ne.s32.totalorder %s89, %s92
      %p101 = scmp.eq.s32.totalorder %s26, 1
      %p102 = por %p100, %p101
      %p103 = scmp.ne.s32.totalorder %s92, %s93
      %p104 = scmp.eq.s32.totalorder %s26, 0
      %p105 = por %p103, %p104
      %p106 = scmp.ne.s32.totalorder %s92, %s93
      %p107 = scmp.eq.s32.totalorder %s27, 1
      %p108 = por %p106, %p107
      %p110 = scmp.ne.s32.totalorder %s93, %s109
      %p111 = scmp.eq.s32.totalorder %s27, 0
      %p112 = por %p110, %p111
      %s113 = ssub.s32 %s30, %s46
      %p114 = scmp.eq.s32.totalorder %s113, 0
      %s116 = sadd.s32 %s115, 1
      %s117 = scalar_select %p114, %s115, %s116
      %p120 = pneg %p114
      %p121 = scmp.eq.s32.totalorder %s21, 1
      %p122 = por %p120, %p121
      %p123 = scmp.ne.s32.totalorder %s115, %s118
      %p124 = scmp.eq.s32.totalorder %s21, 0
      %p125 = por %p123, %p124
      %p126 = scmp.ne.s32.totalorder %s115, %s118
      %p127 = scmp.eq.s32.totalorder %s26, 1
      %p128 = por %p126, %p127
      %p129 = scmp.ne.s32.totalorder %s118, %s119
      %p130 = scmp.eq.s32.totalorder %s26, 0
      %p131 = por %p129, %p130
      %p132 = scmp.ne.s32.totalorder %s118, %s119
      %p133 = scmp.eq.s32.totalorder %s27, 1
      %p134 = por %p132, %p133
      %p136 = scmp.ne.s32.totalorder %s119, %s135
      %p137 = scmp.eq.s32.totalorder %s27, 0
      %p138 = por %p136, %p137
      %s139 = ssub.s32 %s28, %s54
      %s140 = ssub.s32 %s29, %s50
      %s141 = sor.u32 %s139, %s140
      %s142 = ssub.s32 %s30, %s46
      %s143 = sor.u32 %s141, %s142
      %p144 = scmp.eq.s32.totalorder %s143, 0
      %s146 = sadd.s32 %s145, 1
      %s147 = scalar_select %p144, %s145, %s146
      %p150 = pneg %p144
      %p151 = scmp.eq.s32.totalorder %s21, 1
      %p152 = por %p150, %p151
      %p153 = scmp.ne.s32.totalorder %s145, %s148
      %p154 = scmp.eq.s32.totalorder %s21, 0
      %p155 = por %p153, %p154
      %p156 = scmp.ne.s32.totalorder %s145, %s148
      %p157 = scmp.eq.s32.totalorder %s26, 1
      %p158 = por %p156, %p157
      %p159 = scmp.ne.s32.totalorder %s148, %s149
      %p160 = scmp.eq.s32.totalorder %s26, 0
      %p161 = por %p159, %p160
      %p162 = scmp.ne.s32.totalorder %s148, %s149
      %p163 = scmp.eq.s32.totalorder %s27, 1
      %p164 = por %p162, %p163
      %p166 = scmp.ne.s32.totalorder %s149, %s165
      %p167 = scmp.eq.s32.totalorder %s27, 0
      %p168 = por %p166, %p167
      %p169 = scmp.le.s32.totalorder 1, %s21
      %p170 = scmp.lt.s32.totalorder %s21, 3
      %p171 = pnand %p169, %p170
      %p172 = pneg %p171
      // Predicated region
      $region9: #{tpu_custom_call.1} parent=5 // pred_check
        _
      $region10: #{tpu_custom_call.1} parent=5 // pred_check_branch
        %174 = sbr.rel (%p171) target = $region12
      $region11: #{tpu_custom_call.1} parent=5 // pred_region
        %s175 = ssub.s32 %s21, 1
        // Predicated region
        $region13: #{tpu_custom_call.1} parent=11 // pred_check
          %p176 = pneg %p105
        $region14: #{tpu_custom_call.1} parent=11 // pred_check_branch
          %178 = sbr.rel (%p176) target = $region16
        $region15: #{tpu_custom_call.1} parent=11 // pred_region
          %s179 = smul.u32 4, %s35
          %s181 = ssub.s32 256, 256
          %182 = vsyncadd [#allocation9], %s181
          %s183 = sadd.s32 %s34, %s179
          %s184 = smul.addr %s183, 64
          %s185 = scalar_lea.hbm %s2, %s184
          %s186 = sshll.u32 [#allocation8], 4
          %s187 = int_to_ptr.vmem [resolvable:$true] %s186
          %192 = dma.hbm_to_vmem [thread:$0]  %s185, 256, %s187, [#allocation9], 64, 64, 4
        $region16: #{tpu_custom_call.1} parent=11 // pred_fallthru
          _
        // Predicated region
        $region17: #{tpu_custom_call.1} parent=11 // pred_check
          %p193 = pneg %p131
        $region18: #{tpu_custom_call.1} parent=11 // pred_check_branch
          %195 = sbr.rel (%p193) target = $region20
        $region19: #{tpu_custom_call.1} parent=11 // pred_region
          %p196 = scmp.lt.s32.totalorder %s34, 0
          %s197 = scalar_select %p196, %s34, 0
          %s198 = scalar_lea.vmem %s3, %s197
        $region20: #{tpu_custom_call.1} parent=11 // pred_fallthru
          _
      $region12: #{tpu_custom_call.1} parent=5 // pred_fallthru
        _
      %p199 = scmp.lt.s32.totalorder %s21, 2
      // Predicated region
      $region21: #{tpu_custom_call.1} parent=5 // pred_check
        %p200 = pneg %p199
      $region22: #{tpu_custom_call.1} parent=5 // pred_check_branch
        %202 = sbr.rel (%p200) target = $region24
      $region23: #{tpu_custom_call.1} parent=5 // pred_region
        // Predicated region
        $region25: #{tpu_custom_call.1} parent=23 // pred_check
          %p203 = pneg %p71
        $region26: #{tpu_custom_call.1} parent=23 // pred_check_branch
          %205 = sbr.rel (%p203) target = $region28
        $region27: #{tpu_custom_call.1} parent=23 // pred_region
          %s206 = sand.u32 %s61, 1
          %s207 = scalar_lea.sflag [#allocation6], %s206
          %s208 = sand.u32 %s61, 1
          %s209 = smul.addr %s208, 4
          %s210 = scalar_lea.vmem [#allocation5], %s209
          %s212 = ssub.s32 64, 64
          %213 = vsyncadd %s207, %s212
          %s214 = sadd.s32 %s31, %s29
          %s215 = sadd.s32 %s214, %s28
          %s216 = smul.addr %s215, 64
          %s217 = scalar_lea.hbm %s1, %s216
          %s219 = sshll.u32 %s210, 4
          %s220 = int_to_ptr.vmem [resolvable:$true] %s219
          %222 = dma.hbm_to_vmem [thread:$0]  %s217, 64, %s220, %s207
        $region28: #{tpu_custom_call.1} parent=23 // pred_fallthru
          _
      $region24: #{tpu_custom_call.1} parent=5 // pred_fallthru
        _
      %p223 = scmp.le.s32.totalorder 1, %s21
      %p224 = scmp.lt.s32.totalorder %s21, 3
      %p225 = pnand %p223, %p224
      %p226 = pneg %p225
      // Predicated region
      $region29: #{tpu_custom_call.1} parent=5 // pred_check
        _
      $region30: #{tpu_custom_call.1} parent=5 // pred_check_branch
        %228 = sbr.rel (%p225) target = $region32
      $region31: #{tpu_custom_call.1} parent=5 // pred_region
        %s229 = ssub.s32 %s21, 1
        %s230 = sand.u32 %s64, 1
        %s231 = scalar_lea.sflag [#allocation6], %s230
        %s232 = sand.u32 %s64, 1
        %s233 = smul.addr %s232, 4
        %s234 = scalar_lea.vmem [#allocation5], %s233
        // Predicated region
        $region33: #{tpu_custom_call.1} parent=31 // pred_check
          %p235 = pneg %p77
        $region34: #{tpu_custom_call.1} parent=31 // pred_check_branch
          %237 = sbr.rel (%p235) target = $region36
        $region35: #{tpu_custom_call.1} parent=31 // pred_region
          %238 = dma.done %s231, 64
        $region36: #{tpu_custom_call.1} parent=31 // pred_fallthru
          _
        // Predicated region
        $region37: #{tpu_custom_call.1} parent=31 // pred_check
          %p239 = pneg %p105
        $region38: #{tpu_custom_call.1} parent=31 // pred_check_branch
          %241 = sbr.rel (%p239) target = $region40
        $region39: #{tpu_custom_call.1} parent=31 // pred_region
          %242 = dma.done [#allocation9], 256
        $region40: #{tpu_custom_call.1} parent=31 // pred_fallthru
          _
        %s243 = sand.u32 %s64, 1
        %s244 = scalar_lea.sflag [#allocation6], %s243
        %s245 = sand.u32 %s64, 1
        %s246 = smul.addr %s245, 4
        %s247 = scalar_lea.vmem [#allocation5], %s246
        %p248 = pneg %p77
        %p249 = pneg %p74
        %p250 = pneg %p105
        %p251 = pneg %p102
        %p252 = scmp.lt.s32.totalorder %s34, 0
        %s253 = scalar_select %p252, %s34, 0
        %s254 = scalar_lea.vmem %s3, %s253
        %p255 = pneg %p131
        %p256 = pneg %p128
        %p257 = pneg %p161
        %p258 = pneg %p158
        %s259 = sand.u32 %s148, 1
        %s260 = scalar_lea.sflag [#allocation7], %s259
        %s261 = sand.u32 %s148, 1
        %s262 = smul.addr %s261, 8
        %s263 = scalar_lea.vmem [#allocation10], %s262
        %s264 = smul.u32 4, %s35
        %p265 = scmp.lt.s32.totalorder %s34, 0
        %s266 = scalar_select %p265, %s34, 0
        %s267 = scalar_lea.vmem %s3, %s266
        %s269 = smul.u32 %s33, 8
        %s270 = sld [smem:[#allocation4 + %s32]]
        %p271 = scmp.lt.s32.totalorder %s269, %s270
        %p272 = scmp.eq.s32.totalorder %s35, 0
        // Predicated region
        $region41: #{tpu_custom_call.1} parent=31 // pred_check
          %p273 = pneg %p272
        $region42: #{tpu_custom_call.1} parent=31 // pred_check_branch
          %275 = sbr.rel (%p273) target = $region44
        $region43: #{tpu_custom_call.1} parent=31 // pred_region
          %vm276 = vcmask 261120
          %277 = vst.msk [vmem:[#allocation2] sm:$0xff] %vm276, 0.0
        $region44: #{tpu_custom_call.1} parent=31 // pred_fallthru
          _
        // Predicated region
        $region45: #{tpu_custom_call.1} parent=31 // pred_check
          %p278 = pneg %p271
        $region46: #{tpu_custom_call.1} parent=31 // pred_check_branch
          %280 = sbr.rel (%p278) target = $region48
        $region47: #{tpu_custom_call.1} parent=31 // pred_region
          %v281 = vld [vmem:[#allocation2] sm:$0xff]
          %v282 = vld [vmem:[%s234] sm:$0xf]
          %v283 = vld [vmem:[#allocation8] sm:$0xf]
          %v284 = vld [vmem:[#allocation8 + $0x4] sm:$0xf]
          %v285 = vld [vmem:[#allocation8 + $0x8] sm:$0xf]
          %v286 = vld [vmem:[#allocation8 + $0xc] sm:$0xf]
          %v291 = vunpack.c.l.b16 %v283
          %v292 = vunpack.c.l.b16 %v284
          %v293 = vunpack.c.l.b16 %v285
          %v294 = vunpack.c.l.b16 %v286
          %v295 = vpack.c.b16 %v292, %v291
          %v296 = vpack.c.b16 %v294, %v293
          %vm299 = vcmask 261120
          %v301 = vsel %vm299, %v282, 0
          %303 = vmatprep.subr.bf16.mxu0 0
          %304 = vmatpush1.bf16.msra.mxu0 %v295
          %305 = vmatprep.subr.bf16.mxu0 0
          %306 = vmatpush1.bf16.msra.mxu0 %v296
          %307 = vmatprep.subr.bf16.mxu0 0
          %308 = vmatpush1.bf16.msra.mxu0 0
          %309 = vmatprep.subr.bf16.mxu0 0
          %310 = vmatpush1.bf16.msra.mxu0 0
          %311 = vmatprep.subr.bf16.mxu0 0
          %312 = vmatpush1.bf16.msra.mxu0 0
          %313 = vmatprep.subr.bf16.mxu0 0
          %314 = vmatpush1.bf16.msra.mxu0 0
          %315 = vmatprep.subr.bf16.mxu0 0
          %316 = vmatpush1.bf16.msra.mxu0 0
          %317 = vmatprep.subr.bf16.mxu0 0
          %318 = vmatpush1.bf16.msra.mxu0 0
          %319 = vmatprep.subr.bf16.mxu0 0
          %320 = vmatpush1.bf16.msra.mxu0 0
          %321 = vmatprep.subr.bf16.mxu0 0
          %322 = vmatpush1.bf16.msra.mxu0 0
          %323 = vmatprep.subr.bf16.mxu0 0
          %324 = vmatpush1.bf16.msra.mxu0 0
          %325 = vmatprep.subr.bf16.mxu0 0
          %326 = vmatpush1.bf16.msra.mxu0 0
          %327 = vmatprep.subr.bf16.mxu0 0
          %328 = vmatpush1.bf16.msra.mxu0 0
          %329 = vmatprep.subr.bf16.mxu0 0
          %330 = vmatpush1.bf16.msra.mxu0 0
          %331 = vmatprep.subr.bf16.mxu0 0
          %332 = vmatpush1.bf16.msra.mxu0 0
          %333 = vmatprep.subr.bf16.mxu0 0
          %334 = vmatpush1.bf16.msra.mxu0 0
          %335 = vmatprep.mubr.bf16.mxu0 0
          %336 = vmatmul.mubr.bf16.gmra.mrb[0].mxu0 %v301
          %v337 = vpop.f32.mrb[0].mxu0
          %v338 = vadd.f32 0.0, %v337
          %v339 = vpop.f32.mrb[0].mxu0
          %v340 = vpop.f32.mrb[0].mxu0
          %v341 = vpop.f32.mrb[0].mxu0
          %342 = vdwg.mxu0
          %v343 = vadd.f32 %v281, %v338
          %344 = vst.msk [vmem:[#allocation2] sm:$0xff] %vm299, %v343
        $region48: #{tpu_custom_call.1} parent=31 // pred_fallthru
          _
        // Predicated region
        $region49: #{tpu_custom_call.1} parent=31 // pred_check
          %p345 = pneg %p272
        $region50: #{tpu_custom_call.1} parent=31 // pred_check_branch
          %347 = sbr.rel (%p345) target = $region52
        $region51: #{tpu_custom_call.1} parent=31 // pred_region
          %v348 = vlaneseq
          %v349 = vshrl.u32 %v348, 7
          %v350 = vstv %s269
          %v351 = vadd.s32 %v350, %v349
          %v352 = vstv %s270
          %vm353 = vcmp.lt.s32.totalorder %v351, %v352
          %v354 = vld [vmem:[#allocation2] sm:$0xff]
          %v355 = vld [vmem:[%s267] sm:$0x1]
          %v357 = vlaneseq
          %v358 = vshrl.u32 %v357, 7
          %v359 = vsub.s32 0, %v358
          %v360 = vrot.slane %v355, %v359
          %v362 = vadd.f32 %v354, %v360
          %v363 = vsel %vm353, 1, 0
          %vm364 = vcmp.eq.s32.totalorder %v363, 1
          %v365 = vsel %vm364, %v362, 0.0
          %vm366 = vcmask 261120
          %367 = vst.msk [vmem:[%s263] sm:$0xff] %vm366, %v365
        $region52: #{tpu_custom_call.1} parent=31 // pred_fallthru
          _
        %s368 = sand.u32 %s148, 1
        %s369 = scalar_lea.sflag [#allocation7], %s368
        %s370 = sand.u32 %s148, 1
        %s371 = smul.addr %s370, 8
        %s372 = scalar_lea.vmem [#allocation10], %s371
        // Predicated region
        $region53: #{tpu_custom_call.1} parent=31 // pred_check
          %p373 = pneg %p158
        $region54: #{tpu_custom_call.1} parent=31 // pred_check_branch
          %375 = sbr.rel (%p373) target = $region56
        $region55: #{tpu_custom_call.1} parent=31 // pred_region
          %s377 = ssub.s32 128, 128
          %378 = vsyncadd %s369, %s377
          %s379 = sadd.s32 %s34, %s33
          %s380 = sadd.s32 %s379, %s32
          %s381 = smul.addr %s380, 128
          %s382 = scalar_lea.hbm %s4, %s381
          %s384 = sshll.u32 %s372, 4
          %s385 = int_to_ptr.vmem [resolvable:$true] %s384
          %387 = dma.vmem_to_hbm [thread:$0]  %s385, 128, %s382, %s369
        $region56: #{tpu_custom_call.1} parent=31 // pred_fallthru
          _
      $region32: #{tpu_custom_call.1} parent=5 // pred_fallthru
        _
      %p388 = scmp.le.s32.totalorder 2, %s21
      // Predicated region
      $region57: #{tpu_custom_call.1} parent=5 // pred_check
        %p389 = pneg %p388
      $region58: #{tpu_custom_call.1} parent=5 // pred_check_branch
        %391 = sbr.rel (%p389) target = $region60
      $region59: #{tpu_custom_call.1} parent=5 // pred_region
        %s392 = ssub.s32 %s21, 2
        // Predicated region
        $region61: #{tpu_custom_call.1} parent=59 // pred_check
          %p393 = pneg %p164
        $region62: #{tpu_custom_call.1} parent=59 // pred_check_branch
          %395 = sbr.rel (%p393) target = $region64
        $region63: #{tpu_custom_call.1} parent=59 // pred_region
          %s396 = sand.u32 %s149, 1
          %s397 = scalar_lea.sflag [#allocation7], %s396
          %s398 = sand.u32 %s149, 1
          %s399 = smul.addr %s398, 8
          %s400 = scalar_lea.vmem [#allocation10], %s399
          %401 = dma.done %s397, 128
        $region64: #{tpu_custom_call.1} parent=59 // pred_fallthru
          _
      $region60: #{tpu_custom_call.1} parent=5 // pred_fallthru
        _
    $region6: #{tpu_custom_call.1} parent=1 // loop_footer
      %s25 = sadd.s32 1, %s21
    $region7: #{tpu_custom_call.1} parent=1 // loop_footer_branch
      %20 = sbr.rel target = $region3
    $region8: #{tpu_custom_call.1} parent=1 // loop_exit
      _
    %402 = vsyncpa [#allocation6], 1
    %s403 = scalar_lea.sflag [#allocation6], 1
    %404 = vsyncpa %s403, 1
    %405 = vsyncpa [#allocation9], 1
    %406 = vsyncpa [#allocation7], 1
    %s407 = scalar_lea.sflag [#allocation7], 1
    %408 = vsyncpa %s407, 1

</llo_original>
